<compile_context>
chip_gen: v6e
topology: v6e:2x2x1
jax: 0.10.0
libtpu: 0.0.40
codegen_flags: <defaults>
</compile_context>

<pallas_src>
import functools

import jax
import jax.numpy as jnp
from jax.experimental import pallas as pl
from jax.experimental.pallas import tpu as pltpu


def _swiglu_kernel(gate_ref, up_ref, o_ref, *, exact):
    # gate_ref / up_ref / o_ref: (TM, I) tiles.
    g = gate_ref[...].astype(jnp.float32)
    if exact:
        # f32 inputs: exact silu in f32.
        u = up_ref[...].astype(jnp.float32)
        o_ref[...] = (g * jax.nn.sigmoid(g) * u).astype(o_ref.dtype)
    else:
        # 16-bit inputs: sigmoid factor in f32 with the reciprocal on the EUP slot,
        # final multiply in the (narrow) input dtype to save casts / vreg footprint.
        s = pl.reciprocal(1.0 + jnp.exp(-g), approx=True)
        o_ref[...] = (g * s).astype(o_ref.dtype) * up_ref[...]


def _round_up(a, b):
    return ((a + b - 1) // b) * b


def activation_multiply_mlp(x, split_size, *, target_rows=512,
                            vmem_block_budget=40 << 20):
    """x: [B, S, 2*split_size] -> [B, S, split_size] computing silu(gate) * up."""
    B, S, two_i = x.shape
    assert two_i == 2 * split_size, "last dim must be 2 * split_size"
    I = split_size
    rows = B * S
    dtype = x.dtype
    itemsize = jnp.dtype(dtype).itemsize

    # Sublane packing: 8 rows for 32-bit, 16 for 16-bit, 32 for 8-bit dtypes.
    sub = max(8, 32 // itemsize)

    # Row tile selection:
    #   - bounded by the VMEM budget: 3 blocks (gate, up, out) x2 double buffering
    #   - capped at target_rows
    #   - small enough to give >= 2 row blocks (v7x megacore) when rows allow it
    row_bytes = 3 * I * itemsize                     # gate + up + out bytes per row
    tm_vmem = max(vmem_block_budget // (2 * row_bytes), sub)
    tm = min(target_rows, tm_vmem, _round_up(pl.cdiv(rows, 2), sub))
    tm = max((tm // sub) * sub, sub)
    grid = (pl.cdiv(rows, tm),)                      # partial tail block is masked

    exact = itemsize >= 4
    kernel = functools.partial(_swiglu_kernel, exact=exact)

    lane_aligned = (I % 128 == 0)
    if lane_aligned:
        # Zero-copy: gate/up are two lane-dense (tm, I) views of the same flattened
        # array -- column-block 0 is the gate half, column-block 1 is the up half.
        x2d = x.reshape(rows, two_i)
        operands = (x2d, x2d)
        in_specs = [
            pl.BlockSpec((tm, I), lambda i: (i, 0)),
            pl.BlockSpec((tm, I), lambda i: (i, 1)),
        ]
    else:
        # TODO(synk): rare non-lane-aligned intermediate size; host-side split costs
        # one extra HBM pass but keeps full-width blocks (no in-kernel relayout).
        gate2d = x[..., :I].reshape(rows, I)
        up2d = x[..., I:].reshape(rows, I)
        operands = (gate2d, up2d)
        in_specs = [
            pl.BlockSpec((tm, I), lambda i: (i, 0)),
            pl.BlockSpec((tm, I), lambda i: (i, 0)),
        ]

    # VMEM limit from the ACTUAL blocks in flight: 3 blocks x 2 buffers + margin.
    block_bytes = tm * I * itemsize
    vmem_limit = int(min(max(6 * block_bytes + (8 << 20), 16 << 20), 48 << 20))

    out2d = pl.pallas_call(
        kernel,
        out_shape=jax.ShapeDtypeStruct((rows, I), dtype),
        grid=grid,
        in_specs=in_specs,
        out_specs=pl.BlockSpec((tm, I), lambda i: (i, 0)),
        compiler_params=pltpu.CompilerParams(
            dimension_semantics=("parallel",),
            vmem_limit_bytes=vmem_limit,
        ),
    )(*operands)

    return out2d.reshape(B, S, I)


def reference(x, split_size):
    gate = x[..., :split_size].astype(jnp.float32)
    up = x[..., split_size:].astype(jnp.float32)
    return (jax.nn.silu(gate) * up).astype(x.dtype)


if __name__ == "__main__":
    key = jax.random.PRNGKey(0)

    # 1) Small lane-aligned f32 shape consistent with the module:
    #    batch=2, seq=8, intermediate_size // tp_size = 128 -> last dim 256.
    #    rows=16 gives two row blocks (exercises megacore sharding on v7x).
    B, S, I = 2, 8, 128
    x = jax.random.normal(key, (B, S, 2 * I), dtype=jnp.float32)
    out = jax.block_until_ready(activation_multiply_mlp(x, I))
    ref = reference(x, I)
    assert out.shape == (B, S, I)
    assert jnp.allclose(out, ref, atol=1e-5, rtol=1e-5)

    # 2) bf16 with rows (400) not a multiple of the row tile: exercises the masked
    #    trailing row block (no host-side pad / slice) and the fast EUP-sigmoid path.
    B2, S2, I2 = 2, 200, 256
    x2 = jax.random.normal(jax.random.PRNGKey(1), (B2, S2, 2 * I2), dtype=jnp.bfloat16)
    out2 = jax.block_until_ready(activation_multiply_mlp(x2, I2))
    ref2 = reference(x2, I2)
    assert out2.shape == (B2, S2, I2)
    assert jnp.allclose(out2.astype(jnp.float32), ref2.astype(jnp.float32),
                        atol=2e-2, rtol=2e-2)

    # 3) Non-lane-aligned intermediate size (I=96): fallback path, full-width blocks.
    B3, S3, I3 = 2, 8, 96
    x3 = jax.random.normal(jax.random.PRNGKey(2), (B3, S3, 2 * I3), dtype=jnp.float32)
    out3 = jax.block_until_ready(activation_multiply_mlp(x3, I3))
    ref3 = reference(x3, I3)
    assert out3.shape == (B3, S3, I3)
    assert jnp.allclose(out3, ref3, atol=1e-5, rtol=1e-5)

    print("KERNEL_OK")
</pallas_src>

<mosaic_0001>
module attributes {stable_mosaic.version = 11 : i64} {
  func.func @_swiglu_kernel(%arg0: i32, %arg1: memref<8x128xf32, #tpu.memory_space<vmem>>, %arg2: memref<8x128xf32, #tpu.memory_space<vmem>>, %arg3: memref<8x128xf32, #tpu.memory_space<vmem>>) attributes {dimension_semantics = [#tpu.dimension_semantics<parallel>], iteration_bounds = array<i64: 2>, scalar_prefetch = 0 : i64, scratch_operands = 0 : i64, tpu.core_type = #tpu.core_type<tc>, window_params = [{transform_indices = @transform_0, window_bounds = array<i64: 8, 128>}, {transform_indices = @transform_1, window_bounds = array<i64: 8, 128>}, {transform_indices = @transform_2, window_bounds = array<i64: 8, 128>}]} {
    %c0 = arith.constant 0 : index
    %c0_0 = arith.constant 0 : index
    %0 = vector.load %arg1[%c0, %c0_0] : memref<8x128xf32, #tpu.memory_space<vmem>>, vector<8x128xf32>
    %c0_1 = arith.constant 0 : index
    %c0_2 = arith.constant 0 : index
    %1 = vector.load %arg2[%c0_1, %c0_2] : memref<8x128xf32, #tpu.memory_space<vmem>>, vector<8x128xf32>
    %2 = arith.negf %0 : vector<8x128xf32>
    %3 = math.exp %2 : vector<8x128xf32>
    %cst = arith.constant 1.000000e+00 : f32
    %4 = vector.broadcast %cst : f32 to vector<8x128xf32>
    %5 = arith.addf %4, %3 : vector<8x128xf32>
    %6 = arith.divf %4, %5 : vector<8x128xf32>
    %7 = arith.mulf %0, %6 : vector<8x128xf32>
    %8 = arith.mulf %7, %1 : vector<8x128xf32>
    %c0_3 = arith.constant 0 : index
    %c0_4 = arith.constant 0 : index
    %9 = vector.load %arg3[%c0_3, %c0_4] : memref<8x128xf32, #tpu.memory_space<vmem>>, vector<8x128xf32>
    tpu.vector_store %arg3[%c0_3, %c0_4], %8 {strides = array<i32>} : memref<8x128xf32, #tpu.memory_space<vmem>>, vector<8x128xf32>,
    return
  }
  func.func @transform_0(%arg0: i32) -> (i32, i32) {
    %c0_i32 = arith.constant 0 : i32
    %c0_i32_0 = arith.constant 0 : i32
    return %arg0, %c0_i32 : i32, i32
  }
  func.func @transform_1(%arg0: i32) -> (i32, i32) {
    %c1_i32 = arith.constant 1 : i32
    %c0_i32 = arith.constant 0 : i32
    return %arg0, %c1_i32 : i32, i32
  }
  func.func @transform_2(%arg0: i32) -> (i32, i32) {
    %c0_i32 = arith.constant 0 : i32
    %c0_i32_0 = arith.constant 0 : i32
    return %arg0, %c0_i32 : i32, i32
  }
}

</mosaic_0001>

<llo_original>
// kernel: tpu_custom_call.1
$region0: #{tpu_custom_call.1}
  #allocation0 [shape = 'u32[]', space=smem, size = 0x4, offset = 0x4, fixed_abs, tag = 'smem constant byte address 0x4 - core index']
  #allocation1 [shape = 'u32[144,128]{1,0:T(1,128)}', space=vmem, size = 0x12000, scoped, tag = 'internal scratch']
  %s0 = inlined_call_operand.hbm [shape: f32[16,256], index: 0, kind: input, shape index: {}]
  %s1 = inlined_call_operand.hbm [shape: f32[16,256], index: 1, kind: input, shape index: {}]
  %s2 = inlined_call_operand.hbm [shape: f32[16,128], index: 2, kind: output, shape index: {}]
  %s3 = sld [smem:[#allocation0]]
  $region49: #{tpu_custom_call.1} parent=0
    _
  %s5 = ssub.s32 1, %s3
  %s6 = scalar_select 0, %s5, %s3
  $region1: #{tpu_custom_call.1} parent=0
    #allocation2 [shape = 'u8[8192]{0}', space=vmem, size = 0x2000, scoped, tag = 'input window, operand 0']
    #allocation3 [shape = 's32[2]{0}', space=sflag, size = 0x8, scoped, tag = 'scoped memory for tpu_custom_call.1']
    #allocation4 [shape = 's32[2]{0}', space=sflag, size = 0x8, scoped, tag = 'scoped memory for tpu_custom_call.1']
    #allocation5 [shape = 'u8[8192]{0}', space=vmem, size = 0x2000, scoped, tag = 'input window, operand 1']
    #allocation6 [shape = 's32[2]{0}', space=sflag, size = 0x8, scoped, tag = 'scoped memory for tpu_custom_call.1']
    #allocation7 [shape = 'u8[8192]{0}', space=vmem, size = 0x2000, scoped, tag = 'output window, operand 0']
    %7 = vsyncpa [#allocation3], 0
    %s8 = scalar_lea.sflag [#allocation3], 1
    %9 = vsyncpa %s8, 0
    %10 = vsyncpa [#allocation6], 0
    %s11 = scalar_lea.sflag [#allocation6], 1
    %12 = vsyncpa %s11, 0
    %13 = vsyncpa [#allocation4], 0
    %s14 = scalar_lea.sflag [#allocation4], 1
    %15 = vsyncpa %s14, 0
    loop: start=0, step=1, limit=4
    $region2: #{tpu_custom_call.1} parent=1 // loop_pre_header
      _
    $region3: #{tpu_custom_call.1} parent=1 // loop_header
      %s17 = sphi 0, %s21
      %p18 = scmp.ge.s32.totalorder %s17, 4
      %s27 = sphi 0, %s29
      %s30 = sphi 0, %s27
      %s31 = sphi 0, %s30
      %s47 = sphi 0, %s31
      %s53 = sphi 0, %s55
      %s56 = sphi 0, %s53
      %s57 = sphi 0, %s56
      %s73 = sphi 0, %s57
      %s79 = sphi 0, %s81
      %s82 = sphi 0, %s79
      %s83 = sphi 0, %s82
      %s99 = sphi 0, %s83
    $region4: #{tpu_custom_call.1} parent=1 // loop_header_branch
      %20 = sbr.rel (%p18) target = $region8
    $region5: #{tpu_custom_call.1} parent=1 // loop_body
      %s22 = ssub.s32 %s17, 1
      %s23 = ssub.s32 %s17, 2
      %s24 = sadd.s32 %s17, 1
      %s25 = ssub.s32 %s17, %s24
      %p26 = scmp.eq.s32.totalorder %s25, 0
      %s28 = sadd.s32 %s27, 1
      %s29 = scalar_select %p26, %s27, %s28
      %p32 = pneg %p26
      %p33 = scmp.eq.s32.totalorder %s17, 1
      %p34 = por %p32, %p33
      %p35 = scmp.ne.s32.totalorder %s27, %s30
      %p36 = scmp.eq.s32.totalorder %s17, 0
      %p37 = por %p35, %p36
      %p38 = scmp.ne.s32.totalorder %s27, %s30
      %p39 = scmp.eq.s32.totalorder %s22, 1
      %p40 = por %p38, %p39
      %p41 = scmp.ne.s32.totalorder %s30, %s31
      %p42 = scmp.eq.s32.totalorder %s22, 0
      %p43 = por %p41, %p42
      %p44 = scmp.ne.s32.totalorder %s30, %s31
      %p45 = scmp.eq.s32.totalorder %s23, 1
      %p46 = por %p44, %p45
      %p48 = scmp.ne.s32.totalorder %s31, %s47
      %p49 = scmp.eq.s32.totalorder %s23, 0
      %p50 = por %p48, %p49
      %s51 = ssub.s32 %s17, %s24
      %p52 = scmp.eq.s32.totalorder %s51, 0
      %s54 = sadd.s32 %s53, 1
      %s55 = scalar_select %p52, %s53, %s54
      %p58 = pneg %p52
      %p59 = scmp.eq.s32.totalorder %s17, 1
      %p60 = por %p58, %p59
      %p61 = scmp.ne.s32.totalorder %s53, %s56
      %p62 = scmp.eq.s32.totalorder %s17, 0
      %p63 = por %p61, %p62
      %p64 = scmp.ne.s32.totalorder %s53, %s56
      %p65 = scmp.eq.s32.totalorder %s22, 1
      %p66 = por %p64, %p65
      %p67 = scmp.ne.s32.totalorder %s56, %s57
      %p68 = scmp.eq.s32.totalorder %s22, 0
      %p69 = por %p67, %p68
      %p70 = scmp.ne.s32.totalorder %s56, %s57
      %p71 = scmp.eq.s32.totalorder %s23, 1
      %p72 = por %p70, %p71
      %p74 = scmp.ne.s32.totalorder %s57, %s73
      %p75 = scmp.eq.s32.totalorder %s23, 0
      %p76 = por %p74, %p75
      %s77 = ssub.s32 %s17, %s24
      %p78 = scmp.eq.s32.totalorder %s77, 0
      %s80 = sadd.s32 %s79, 1
      %s81 = scalar_select %p78, %s79, %s80
      %p84 = pneg %p78
      %p85 = scmp.eq.s32.totalorder %s17, 1
      %p86 = por %p84, %p85
      %p87 = scmp.ne.s32.totalorder %s79, %s82
      %p88 = scmp.eq.s32.totalorder %s17, 0
      %p89 = por %p87, %p88
      %p90 = scmp.ne.s32.totalorder %s79, %s82
      %p91 = scmp.eq.s32.totalorder %s22, 1
      %p92 = por %p90, %p91
      %p93 = scmp.ne.s32.totalorder %s82, %s83
      %p94 = scmp.eq.s32.totalorder %s22, 0
      %p95 = por %p93, %p94
      %p96 = scmp.ne.s32.totalorder %s82, %s83
      %p97 = scmp.eq.s32.totalorder %s23, 1
      %p98 = por %p96, %p97
      %p100 = scmp.ne.s32.totalorder %s83, %s99
      %p101 = scmp.eq.s32.totalorder %s23, 0
      %p102 = por %p100, %p101
      %p103 = scmp.le.s32.totalorder 1, %s17
      %p104 = scmp.lt.s32.totalorder %s17, 3
      %p105 = pnand %p103, %p104
      %p106 = pneg %p105
      // Predicated region
      $region9: #{tpu_custom_call.1} parent=5 // pred_check
        _
      $region10: #{tpu_custom_call.1} parent=5 // pred_check_branch
        %108 = sbr.rel (%p105) target = $region12
      $region11: #{tpu_custom_call.1} parent=5 // pred_region
        %s109 = ssub.s32 %s17, 1
      $region12: #{tpu_custom_call.1} parent=5 // pred_fallthru
        _
      %p110 = scmp.lt.s32.totalorder %s17, 2
      // Predicated region
      $region13: #{tpu_custom_call.1} parent=5 // pred_check
        %p111 = pneg %p110
      $region14: #{tpu_custom_call.1} parent=5 // pred_check_branch
        %113 = sbr.rel (%p111) target = $region16
      $region15: #{tpu_custom_call.1} parent=5 // pred_region
        // Predicated region
        $region17: #{tpu_custom_call.1} parent=15 // pred_check
          %p114 = pneg %p37
        $region18: #{tpu_custom_call.1} parent=15 // pred_check_branch
          %116 = sbr.rel (%p114) target = $region20
        $region19: #{tpu_custom_call.1} parent=15 // pred_region
          %s117 = sand.u32 %s27, 1
          %s118 = scalar_lea.sflag [#allocation3], %s117
          %s119 = sand.u32 %s27, 1
          %s120 = smul.addr %s119, 8
          %s121 = scalar_lea.vmem [#allocation2], %s120
          %s123 = ssub.s32 128, 128
          %124 = vsyncadd %s118, %s123
          %s125 = smul.addr %s17, 2
          %s126 = smul.addr %s125, 128
          %s127 = scalar_lea.hbm %s0, %s126
          %s129 = sshll.u32 %s121, 4
          %s130 = int_to_ptr.vmem [resolvable:$true] %s129
          %132 = dma.hbm_to_vmem [thread:$0]  %s127, 128, %s130, %s118
        $region20: #{tpu_custom_call.1} parent=15 // pred_fallthru
          _
        // Predicated region
        $region21: #{tpu_custom_call.1} parent=15 // pred_check
          %p133 = pneg %p63
        $region22: #{tpu_custom_call.1} parent=15 // pred_check_branch
          %135 = sbr.rel (%p133) target = $region24
        $region23: #{tpu_custom_call.1} parent=15 // pred_region
          %s136 = sand.u32 %s53, 1
          %s137 = scalar_lea.sflag [#allocation6], %s136
          %s138 = sand.u32 %s53, 1
          %s139 = smul.addr %s138, 8
          %s140 = scalar_lea.vmem [#allocation5], %s139
          %s142 = ssub.s32 128, 128
          %143 = vsyncadd %s137, %s142
          %s144 = smul.addr %s17, 2
          %s145 = sadd.s32 1, %s144
          %s146 = smul.addr %s145, 128
          %s147 = scalar_lea.hbm %s1, %s146
          %s149 = sshll.u32 %s140, 4
          %s150 = int_to_ptr.vmem [resolvable:$true] %s149
          %152 = dma.hbm_to_vmem [thread:$0]  %s147, 128, %s150, %s137
        $region24: #{tpu_custom_call.1} parent=15 // pred_fallthru
          _
      $region16: #{tpu_custom_call.1} parent=5 // pred_fallthru
        _
      %p153 = scmp.le.s32.totalorder 1, %s17
      %p154 = scmp.lt.s32.totalorder %s17, 3
      %p155 = pnand %p153, %p154
      %p156 = pneg %p155
      // Predicated region
      $region25: #{tpu_custom_call.1} parent=5 // pred_check
        _
      $region26: #{tpu_custom_call.1} parent=5 // pred_check_branch
        %158 = sbr.rel (%p155) target = $region28
      $region27: #{tpu_custom_call.1} parent=5 // pred_region
        %s159 = ssub.s32 %s17, 1
        %s160 = sand.u32 %s30, 1
        %s161 = scalar_lea.sflag [#allocation3], %s160
        %s162 = sand.u32 %s30, 1
        %s163 = smul.addr %s162, 8
        %s164 = scalar_lea.vmem [#allocation2], %s163
        // Predicated region
        $region29: #{tpu_custom_call.1} parent=27 // pred_check
          %p165 = pneg %p43
        $region30: #{tpu_custom_call.1} parent=27 // pred_check_branch
          %167 = sbr.rel (%p165) target = $region32
        $region31: #{tpu_custom_call.1} parent=27 // pred_region
          %168 = dma.done %s161, 128
        $region32: #{tpu_custom_call.1} parent=27 // pred_fallthru
          _
        %s169 = sand.u32 %s56, 1
        %s170 = scalar_lea.sflag [#allocation6], %s169
        %s171 = sand.u32 %s56, 1
        %s172 = smul.addr %s171, 8
        %s173 = scalar_lea.vmem [#allocation5], %s172
        // Predicated region
        $region33: #{tpu_custom_call.1} parent=27 // pred_check
          %p174 = pneg %p69
        $region34: #{tpu_custom_call.1} parent=27 // pred_check_branch
          %176 = sbr.rel (%p174) target = $region36
        $region35: #{tpu_custom_call.1} parent=27 // pred_region
          %177 = dma.done %s170, 128
        $region36: #{tpu_custom_call.1} parent=27 // pred_fallthru
          _
        %s178 = sand.u32 %s30, 1
        %s179 = scalar_lea.sflag [#allocation3], %s178
        %s180 = sand.u32 %s30, 1
        %s181 = smul.addr %s180, 8
        %s182 = scalar_lea.vmem [#allocation2], %s181
        %p183 = pneg %p43
        %p184 = pneg %p40
        %s185 = sand.u32 %s56, 1
        %s186 = scalar_lea.sflag [#allocation6], %s185
        %s187 = sand.u32 %s56, 1
        %s188 = smul.addr %s187, 8
        %s189 = scalar_lea.vmem [#allocation5], %s188
        %p190 = pneg %p69
        %p191 = pneg %p66
        %p192 = pneg %p95
        %p193 = pneg %p92
        %s194 = sand.u32 %s82, 1
        %s195 = scalar_lea.sflag [#allocation4], %s194
        %s196 = sand.u32 %s82, 1
        %s197 = smul.addr %s196, 8
        %s198 = scalar_lea.vmem [#allocation7], %s197
        %v199 = vld [vmem:[%s164] sm:$0xff]
        %v200 = vld [vmem:[%s173] sm:$0xff]
        %v201 = vxor.u32 %v199, 2147483648
        %v202 = vmul.f32 %v201, 1.442695
        %v203 = vpow.pop %v202
        %v204 = vadd.f32 %v203, 1.0
        %v205 = vrcp.pop %v204
        %v206 = vmul.f32 1.0, %v205
        %v207 = vmul.f32 %v199, %v206
        %v208 = vmul.f32 %v207, %v200
        %209 = vst [vmem:[%s198] sm:$0xff] %v208
        %s210 = sand.u32 %s82, 1
        %s211 = scalar_lea.sflag [#allocation4], %s210
        %s212 = sand.u32 %s82, 1
        %s213 = smul.addr %s212, 8
        %s214 = scalar_lea.vmem [#allocation7], %s213
        // Predicated region
        $region37: #{tpu_custom_call.1} parent=27 // pred_check
          %p215 = pneg %p92
        $region38: #{tpu_custom_call.1} parent=27 // pred_check_branch
          %217 = sbr.rel (%p215) target = $region40
        $region39: #{tpu_custom_call.1} parent=27 // pred_region
          %s219 = ssub.s32 128, 128
          %220 = vsyncadd %s211, %s219
          %s221 = smul.addr %s22, 128
          %s222 = scalar_lea.hbm %s2, %s221
          %s224 = sshll.u32 %s214, 4
          %s225 = int_to_ptr.vmem [resolvable:$true] %s224
          %227 = dma.vmem_to_hbm [thread:$0]  %s225, 128, %s222, %s211
        $region40: #{tpu_custom_call.1} parent=27 // pred_fallthru
          _
      $region28: #{tpu_custom_call.1} parent=5 // pred_fallthru
        _
      %p228 = scmp.le.s32.totalorder 2, %s17
      // Predicated region
      $region41: #{tpu_custom_call.1} parent=5 // pred_check
        %p229 = pneg %p228
      $region42: #{tpu_custom_call.1} parent=5 // pred_check_branch
        %231 = sbr.rel (%p229) target = $region44
      $region43: #{tpu_custom_call.1} parent=5 // pred_region
        %s232 = ssub.s32 %s17, 2
        // Predicated region
        $region45: #{tpu_custom_call.1} parent=43 // pred_check
          %p233 = pneg %p98
        $region46: #{tpu_custom_call.1} parent=43 // pred_check_branch
          %235 = sbr.rel (%p233) target = $region48
        $region47: #{tpu_custom_call.1} parent=43 // pred_region
          %s236 = sand.u32 %s83, 1
          %s237 = scalar_lea.sflag [#allocation4], %s236
          %s238 = sand.u32 %s83, 1
          %s239 = smul.addr %s238, 8
          %s240 = scalar_lea.vmem [#allocation7], %s239
          %241 = dma.done %s237, 128
        $region48: #{tpu_custom_call.1} parent=43 // pred_fallthru
          _
      $region44: #{tpu_custom_call.1} parent=5 // pred_fallthru
        _
    $region6: #{tpu_custom_call.1} parent=1 // loop_footer
      %s21 = sadd.s32 1, %s17
    $region7: #{tpu_custom_call.1} parent=1 // loop_footer_branch
      %16 = sbr.rel target = $region3
    $region8: #{tpu_custom_call.1} parent=1 // loop_exit
      _
    %242 = vsyncpa [#allocation3], 1
    %s243 = scalar_lea.sflag [#allocation3], 1
    %244 = vsyncpa %s243, 1
    %245 = vsyncpa [#allocation6], 1
    %s246 = scalar_lea.sflag [#allocation6], 1
    %247 = vsyncpa %s246, 1
    %248 = vsyncpa [#allocation4], 1
    %s249 = scalar_lea.sflag [#allocation4], 1
    %250 = vsyncpa %s249, 1

</llo_original>
